<compile_context>
chip_gen: v7x
topology: tpu7x:2x2x1
jax: 0.10.0
libtpu: 0.0.40
codegen_flags: <defaults>
</compile_context>

<pallas_src>
import jax
import jax.numpy as jnp
from jax.experimental import pallas as pl
from jax.experimental.pallas import tpu as pltpu


def _linear_kernel(x_ref, w_ref, o_ref):
    # x_ref: (tm, C) row tile; w_ref: (C, tn) pre-transposed weight tile;
    # o_ref: (tm, tn).  Plain NN contraction on the MXU, f32 accumulation.
    o_ref[...] = jnp.dot(
        x_ref[...], w_ref[...], preferred_element_type=jnp.float32
    ).astype(o_ref.dtype)


def _vmem_budget_bytes():
    """Usable VMEM for this generation = physical capacity minus ~8 MiB headroom."""
    cap = 64 << 20  # conservative default = v7x per-TensorCore VMEM
    try:
        info = pltpu.get_tpu_info()
        cap = int(getattr(info, "vmem_capacity_bytes", cap))
    except Exception:
        pass
    return max(cap - (8 << 20), 16 << 20)


def feature_adapter_forward(x, weight, *, tm=512, tn=None, compute_dtype=None):
    """Pallas equivalent of FeatureAdapter.forward (nn.Linear, bias=False).

    x:      (B, HW, C) or (M, C)
    weight: (C, C) nn.Linear weight; computes y = x_flat @ weight.T
    Returns (B*HW, C) or (M, C) in x.dtype (the module does not reshape back).

    tm / tn are hints; they are clamped / grown to the per-generation VMEM
    budget.  compute_dtype=jnp.bfloat16 casts operands (f32 accumulation kept)
    for ~2x HBM-traffic reduction when exact f32 operands are not required.
    """
    out_dtype = x.dtype
    if x.ndim == 3:
        C = x.shape[-1]
        x2 = x.reshape(-1, C)
    else:
        x2 = x
    M, C = x2.shape
    assert weight.shape == (C, C)

    if compute_dtype is not None:
        x2 = x2.astype(compute_dtype)
        weight = weight.astype(compute_dtype)

    # One-time (C, C) transpose in the wrapper so the kernel contraction is
    # plain (tm, K) x (K, tn); avoids any per-grid-step weight relayout.
    w_t = weight.T  # y = x @ w_t

    xb = x2.dtype.itemsize
    wb = w_t.dtype.itemsize
    ob = jnp.dtype(out_dtype).itemsize

    budget = _vmem_budget_bytes()
    slack = 2 << 20

    # Sublane packing of the operand dtype: 8 (32-bit) / 16 (bf16) / 32 (8-bit).
    sub = max(8, 32 // xb)

    # ---- Rows: no full-array pad.  Only M smaller than one sublane tile gets
    # padded (a handful of rows); otherwise the grid runs on the unpadded rows
    # and Pallas clips the partial last tile (each output row depends only on
    # its own input row, so garbage tail reads only feed discarded writes).
    m_pad = sub - M if M < sub else 0
    if m_pad:
        x2 = jnp.pad(x2, ((0, m_pad), (0, 0)))
    Mg = M + m_pad  # rows seen by the grid

    tm = max(sub, (min(int(tm), Mg) // sub) * sub)

    # ---- Working-set models (double-buffered streamed operands).
    def resident_ws(tm_):
        return 2 * tm_ * C * xb + 2 * tm_ * C * ob + C * C * wb + slack

    def tiled_ws(tm_, tn_):
        return 2 * tm_ * C * xb + 2 * tm_ * tn_ * ob + 2 * C * tn_ * wb + slack

    auto_tn = tn is None
    if auto_tn:
        if resident_ws(tm) <= budget:
            tn = C  # full weight resident: read from HBM exactly once
        else:
            # Largest lane-dense divisor of C whose tiled working set fits.
            cands = sorted((d for d in range(128, C, 128) if C % d == 0),
                           reverse=True)
            tn = next((d for d in cands if tiled_ws(tm, d) <= budget), None)
            if tn is None:
                # No lane-dense divisor fits (or exists): shrink the row tile
                # and keep the weight resident instead.
                # TODO(synk): K-tiled (reduction-axis) variant with a f32 VMEM
                # accumulator for feature dims where even this overflows VMEM.
                while tm > sub and resident_ws(tm) > budget:
                    tm = max(sub, (tm // 2) // sub * sub)
                tn = C
    assert C % tn == 0 and (tn == C or tn % 128 == 0), (C, tn)
    n_tiles = C // tn

    # ---- Tiled-N regime: weight is re-streamed once per row tile, so grow tm
    # as far as the per-generation VMEM budget allows (~512 on v7x, 1-2K on
    # 128 MiB v5e/v6e) to cut that traffic.
    if n_tiles > 1:
        tm_cap = min(2048, (Mg // sub) * sub)
        while tm * 2 <= tm_cap and tiled_ws(tm * 2, tn) <= budget:
            tm *= 2

    m_tiles = pl.cdiv(Mg, tm)

    # ---- v7x megacore: a 1x1 grid leaves one TensorCore idle; split N so the
    # 'parallel' axes have >=2 steps.  Negligible on single-TC v5e/v6e.
    if auto_tn and m_tiles == 1 and n_tiles == 1 and C % 256 == 0:
        tn = C // 2
        n_tiles = 2

    x_spec = pl.BlockSpec((tm, C), lambda i, j: (i, 0))
    if n_tiles == 1:
        # Resident weight: constant index_map + single buffer (no wasted 2x VMEM).
        w_spec = pl.BlockSpec((C, C), lambda i, j: (0, 0),
                              pipeline_mode=pl.Buffered(1))
        w_bufs = 1
    else:
        w_spec = pl.BlockSpec((C, tn), lambda i, j: (0, j))
        w_bufs = 2
    o_spec = pl.BlockSpec((tm, tn), lambda i, j: (i, j))

    # Scoped VMEM: actual working set, never above the physical budget.
    ws = 2 * tm * C * xb + 2 * tm * tn * ob + w_bufs * C * tn * wb + slack
    vmem_limit = int(min(max(ws, 32 << 20), budget))

    cost = pl.CostEstimate(
        flops=2 * Mg * C * C,
        transcendentals=0,
        bytes_accessed=Mg * C * xb + C * C * wb + Mg * C * ob,
    )

    out = pl.pallas_call(
        _linear_kernel,
        out_shape=jax.ShapeDtypeStruct((Mg, C), out_dtype),
        grid_spec=pltpu.PrefetchScalarGridSpec(
            num_scalar_prefetch=0,
            grid=(m_tiles, n_tiles),
            in_specs=[x_spec, w_spec],
            out_specs=o_spec,
        ),
        compiler_params=pltpu.CompilerParams(
            dimension_semantics=("parallel", "parallel"),
            vmem_limit_bytes=vmem_limit,
        ),
        cost_estimate=cost,
    )(x2, w_t)

    if m_pad:
        out = out[:M]
    return out


def make_params(feature_dim, key):
    # nn.init.xavier_normal_: std = sqrt(2 / (fan_in + fan_out))
    std = (2.0 / (feature_dim + feature_dim)) ** 0.5
    return jax.random.normal(key, (feature_dim, feature_dim), jnp.float32) * std


if __name__ == "__main__":
    feature_dim = 128
    B, HW = 2, 16

    key = jax.random.PRNGKey(0)
    kx, kw, kx2 = jax.random.split(key, 3)

    x = jax.random.normal(kx, (B, HW, feature_dim), jnp.float32)
    weight = make_params(feature_dim, kw)

    # Exact-f32 path (matches the PyTorch module's numerics).
    y = jax.block_until_ready(feature_adapter_forward(x, weight))
    ref = x.reshape(-1, feature_dim) @ weight.T
    assert y.shape == (B * HW, feature_dim)
    assert jnp.allclose(y, ref, atol=1e-4, rtol=1e-4)

    # Ragged M (not a multiple of the row tile / sublane count): exercises the
    # partial-tile path with NO full-array pad.
    x_tail = jax.random.normal(kx2, (3, 13, feature_dim), jnp.float32)  # M = 39
    y_tail = jax.block_until_ready(feature_adapter_forward(x_tail, weight))
    ref_tail = x_tail.reshape(-1, feature_dim) @ weight.T
    assert y_tail.shape == (39, feature_dim)
    assert jnp.allclose(y_tail, ref_tail, atol=1e-4, rtol=1e-4)

    # bf16-operand / f32-accumulation path (memory-bound speedup knob).
    y_bf16 = jax.block_until_ready(
        feature_adapter_forward(x, weight, compute_dtype=jnp.bfloat16))
    assert y_bf16.shape == (B * HW, feature_dim)
    assert jnp.allclose(y_bf16, ref, atol=5e-2, rtol=5e-2)

    print("KERNEL_OK")
</pallas_src>

<mosaic_0001>
module attributes {stable_mosaic.version = 11 : i64} {
  func.func @_linear_kernel(%arg0: i32, %arg1: i32, %arg2: memref<32x128xf32, #tpu.memory_space<vmem>>, %arg3: memref<128x128xf32, #tpu.memory_space<vmem>>, %arg4: memref<32x128xf32, #tpu.memory_space<vmem>>) attributes {dimension_semantics = [#tpu.dimension_semantics<parallel>, #tpu.dimension_semantics<parallel>], iteration_bounds = array<i64: 1, 1>, scalar_prefetch = 0 : i64, scratch_operands = 0 : i64, tpu.core_type = #tpu.core_type<tc>, window_params = [{transform_indices = @transform_0, window_bounds = array<i64: 32, 128>}, {pipeline_mode = #tpu.pipeline_mode<synchronous>, transform_indices = @transform_1, window_bounds = array<i64: 128, 128>}, {transform_indices = @transform_2, window_bounds = array<i64: 32, 128>}]} {
    %c0 = arith.constant 0 : index
    %c0_0 = arith.constant 0 : index
    %0 = vector.load %arg2[%c0, %c0_0] : memref<32x128xf32, #tpu.memory_space<vmem>>, vector<32x128xf32>
    %c0_1 = arith.constant 0 : index
    %c0_2 = arith.constant 0 : index
    %1 = vector.load %arg3[%c0_1, %c0_2] : memref<128x128xf32, #tpu.memory_space<vmem>>, vector<128x128xf32>
    %cst = arith.constant dense<0.000000e+00> : vector<32x128xf32>
    %2 = tpu.matmul %0, %1, %cst {dimension_numbers = #tpu.dot_dimension_numbers<[1], [0], [0], [1], [0, 0, 1, 1], [], []>} : vector<32x128xf32>, vector<128x128xf32>, vector<32x128xf32> -> vector<32x128xf32>
    %c0_3 = arith.constant 0 : index
    %c0_4 = arith.constant 0 : index
    %3 = vector.load %arg4[%c0_3, %c0_4] : memref<32x128xf32, #tpu.memory_space<vmem>>, vector<32x128xf32>
    tpu.vector_store %arg4[%c0_3, %c0_4], %2 {strides = array<i32>} : memref<32x128xf32, #tpu.memory_space<vmem>>, vector<32x128xf32>,
    return
  }
  func.func @transform_0(%arg0: i32, %arg1: i32) -> (i32, i32) {
    %c0_i32 = arith.constant 0 : i32
    %c0_i32_0 = arith.constant 0 : i32
    return %arg0, %c0_i32 : i32, i32
  }
  func.func @transform_1(%arg0: i32, %arg1: i32) -> (i32, i32) {
    %c0_i32 = arith.constant 0 : i32
    %c0_i32_0 = arith.constant 0 : i32
    %c0_i32_1 = arith.constant 0 : i32
    return %c0_i32, %c0_i32_0 : i32, i32
  }
  func.func @transform_2(%arg0: i32, %arg1: i32) -> (i32, i32) {
    %c0_i32 = arith.constant 0 : i32
    return %arg0, %arg1 : i32, i32
  }
}

</mosaic_0001>

<llo_original>
// kernel: tpu_custom_call.1
$region0: #{tpu_custom_call.1}
  #allocation0 [shape = 'u32[]', space=smem, size = 0x4, offset = 0x4, fixed_abs, tag = 'smem constant byte address 0x4 - core index']
  #allocation1 [shape = 'u32[144,128]{1,0:T(1,128)}', space=vmem, size = 0x12000, scoped, tag = 'internal scratch']
  %s0 = inlined_call_operand.hbm [shape: f32[32,128], index: 0, kind: input, shape index: {}]
  %s1 = inlined_call_operand.hbm [shape: f32[128,128], index: 1, kind: input, shape index: {}]
  %s2 = inlined_call_operand.hbm [shape: f32[32,128], index: 2, kind: output, shape index: {}]
  %s3 = sld [smem:[#allocation0]]
  $region26: #{tpu_custom_call.1} parent=0
    _
  %s5 = ssub.s32 1, %s3
  %s6 = scalar_select 0, %s5, %s3
  $region1: #{tpu_custom_call.1} parent=0
    #allocation2 [shape = 'u8[16384]{0}', space=vmem, size = 0x4000, scoped, tag = 'input window, operand 0, single buffered']
    #allocation3 [shape = 's32[1]{0}', space=sflag, size = 0x4, scoped, tag = 'scoped memory for tpu_custom_call.1']
    #allocation4 [shape = 's32[1]{0}', space=sflag, size = 0x4, scoped, tag = 'scoped memory for tpu_custom_call.1']
    #allocation5 [shape = 'u8[65536]{0}', space=vmem, size = 0x10000, scoped, tag = 'input window, operand 1, single buffered']
    #allocation6 [shape = 's32[1]{0}', space=sflag, size = 0x4, scoped, tag = 'scoped memory for tpu_custom_call.1']
    #allocation7 [shape = 'u8[16384]{0}', space=vmem, size = 0x4000, scoped, tag = 'output window, operand 0, single buffered']
    %7 = vsyncpa [#allocation3], 0
    %8 = vsyncpa [#allocation6], 0
    %9 = vsyncpa [#allocation4], 0
    // Predicated region
    $region2: #{tpu_custom_call.1} parent=1 // pred_check
      _
    $region3: #{tpu_custom_call.1} parent=1 // pred_check_branch
      %11 = sbr.rel (0) target = $region5
    $region4: #{tpu_custom_call.1} parent=1 // pred_region
      %s13 = ssub.s32 512, 512
      %14 = vsyncadd [#allocation3], %s13
      %s15 = sshll.u32 [#allocation2], 4
      %s16 = int_to_ptr.vmem [resolvable:$true] %s15
      %21 = dma.hbm_to_vmem [thread:$0]  %s0, 512, %s16, [#allocation3], 128, 128, 8
    $region5: #{tpu_custom_call.1} parent=1 // pred_fallthru
      _
    // Predicated region
    $region6: #{tpu_custom_call.1} parent=1 // pred_check
      _
    $region7: #{tpu_custom_call.1} parent=1 // pred_check_branch
      %23 = sbr.rel (0) target = $region9
    $region8: #{tpu_custom_call.1} parent=1 // pred_region
      %s25 = ssub.s32 2048, 2048
      %26 = vsyncadd [#allocation6], %s25
      %s27 = sshll.u32 [#allocation5], 4
      %s28 = int_to_ptr.vmem [resolvable:$true] %s27
      %33 = dma.hbm_to_vmem [thread:$0]  %s1, 2048, %s28, [#allocation6], 128, 128, 8
    $region9: #{tpu_custom_call.1} parent=1 // pred_fallthru
      _
    // Predicated region
    $region10: #{tpu_custom_call.1} parent=1 // pred_check
      _
    $region11: #{tpu_custom_call.1} parent=1 // pred_check_branch
      %35 = sbr.rel (0) target = $region13
    $region12: #{tpu_custom_call.1} parent=1 // pred_region
      %36 = dma.done [#allocation3], 512
    $region13: #{tpu_custom_call.1} parent=1 // pred_fallthru
      _
    // Predicated region
    $region14: #{tpu_custom_call.1} parent=1 // pred_check
      _
    $region15: #{tpu_custom_call.1} parent=1 // pred_check_branch
      %38 = sbr.rel (0) target = $region17
    $region16: #{tpu_custom_call.1} parent=1 // pred_region
      %39 = dma.done [#allocation6], 2048
    $region17: #{tpu_custom_call.1} parent=1 // pred_fallthru
      _
    %v40 = vld [vmem:[#allocation2] sm:$0xff]
    %v41 = vld [vmem:[#allocation2 + $0x8] sm:$0xff]
    %v42 = vld [vmem:[#allocation2 + $0x10] sm:$0xff]
    %v43 = vld [vmem:[#allocation2 + $0x18] sm:$0xff]
    %v44 = vld [vmem:[#allocation5] sm:$0xff]
    %v45 = vld [vmem:[#allocation5 + $0x8] sm:$0xff]
    %v46 = vld [vmem:[#allocation5 + $0x10] sm:$0xff]
    %v47 = vld [vmem:[#allocation5 + $0x18] sm:$0xff]
    %v48 = vld [vmem:[#allocation5 + $0x20] sm:$0xff]
    %v49 = vld [vmem:[#allocation5 + $0x28] sm:$0xff]
    %v50 = vld [vmem:[#allocation5 + $0x30] sm:$0xff]
    %v51 = vld [vmem:[#allocation5 + $0x38] sm:$0xff]
    %v52 = vld [vmem:[#allocation5 + $0x40] sm:$0xff]
    %v53 = vld [vmem:[#allocation5 + $0x48] sm:$0xff]
    %v54 = vld [vmem:[#allocation5 + $0x50] sm:$0xff]
    %v55 = vld [vmem:[#allocation5 + $0x58] sm:$0xff]
    %v56 = vld [vmem:[#allocation5 + $0x60] sm:$0xff]
    %v57 = vld [vmem:[#allocation5 + $0x68] sm:$0xff]
    %v58 = vld [vmem:[#allocation5 + $0x70] sm:$0xff]
    %v59 = vld [vmem:[#allocation5 + $0x78] sm:$0xff]
    %60 = vmatprep.subr.mxu0 0.0
    %61 = vmatpush1.msra.mxu0 %v44
    %62 = vmatprep.subr.mxu0 0.0
    %63 = vmatpush1.msra.mxu0 %v45
    %64 = vmatprep.subr.mxu0 0.0
    %65 = vmatpush1.msra.mxu0 %v46
    %66 = vmatprep.subr.mxu0 0.0
    %67 = vmatpush1.msra.mxu0 %v47
    %68 = vmatprep.subr.mxu0 0.0
    %69 = vmatpush1.msra.mxu0 %v48
    %70 = vmatprep.subr.mxu0 0.0
    %71 = vmatpush1.msra.mxu0 %v49
    %72 = vmatprep.subr.mxu0 0.0
    %73 = vmatpush1.msra.mxu0 %v50
    %74 = vmatprep.subr.mxu0 0.0
    %75 = vmatpush1.msra.mxu0 %v51
    %76 = vmatprep.subr.mxu0 0.0
    %77 = vmatpush1.msra.mxu0 %v52
    %78 = vmatprep.subr.mxu0 0.0
    %79 = vmatpush1.msra.mxu0 %v53
    %80 = vmatprep.subr.mxu0 0.0
    %81 = vmatpush1.msra.mxu0 %v54
    %82 = vmatprep.subr.mxu0 0.0
    %83 = vmatpush1.msra.mxu0 %v55
    %84 = vmatprep.subr.mxu0 0.0
    %85 = vmatpush1.msra.mxu0 %v56
    %86 = vmatprep.subr.mxu0 0.0
    %87 = vmatpush1.msra.mxu0 %v57
    %88 = vmatprep.subr.mxu0 0.0
    %89 = vmatpush1.msra.mxu0 %v58
    %90 = vmatprep.subr.mxu0 0.0
    %91 = vmatpush1.msra.mxu0 %v59
    %92 = vmatprep.subr.mxu0 0.0
    %93 = vmatpush1.msra.mxu0 0.0
    %94 = vmatprep.subr.mxu0 0.0
    %95 = vmatpush1.msra.mxu0 0.0
    %96 = vmatprep.subr.mxu0 0.0
    %97 = vmatpush1.msra.mxu0 0.0
    %98 = vmatprep.subr.mxu0 0.0
    %99 = vmatpush1.msra.mxu0 0.0
    %100 = vmatprep.subr.mxu0 0.0
    %101 = vmatpush1.msra.mxu0 0.0
    %102 = vmatprep.subr.mxu0 0.0
    %103 = vmatpush1.msra.mxu0 0.0
    %104 = vmatprep.subr.mxu0 0.0
    %105 = vmatpush1.msra.mxu0 0.0
    %106 = vmatprep.subr.mxu0 0.0
    %107 = vmatpush1.msra.mxu0 0.0
    %108 = vmatprep.subr.mxu0 0.0
    %109 = vmatpush1.msra.mxu0 0.0
    %110 = vmatprep.subr.mxu0 0.0
    %111 = vmatpush1.msra.mxu0 0.0
    %112 = vmatprep.subr.mxu0 0.0
    %113 = vmatpush1.msra.mxu0 0.0
    %114 = vmatprep.subr.mxu0 0.0
    %115 = vmatpush1.msra.mxu0 0.0
    %116 = vmatprep.subr.mxu0 0.0
    %117 = vmatpush1.msra.mxu0 0.0
    %118 = vmatprep.subr.mxu0 0.0
    %119 = vmatpush1.msra.mxu0 0.0
    %120 = vmatprep.subr.mxu0 0.0
    %121 = vmatpush1.msra.mxu0 0.0
    %122 = vmatprep.subr.mxu0 0.0
    %123 = vmatpush1.msra.mxu0 0.0
    %124 = vmatprep.mubr.f32.mxu0 0.0
    %125 = vmatmul.mubr.f32.gmra.mrb[0].mxu0 %v40
    %v126 = vpop.f32.mrb[0].mxu0
    %v127 = vadd.f32 0.0, %v126
    %v128 = vpop.f32.mrb[0].mxu0
    %129 = vmatprep.mubr.f32.mxu0 0.0
    %130 = vmatmul.mubr.f32.gmra.mrb[0].mxu0 %v41
    %v131 = vpop.f32.mrb[0].mxu0
    %v132 = vadd.f32 0.0, %v131
    %v133 = vpop.f32.mrb[0].mxu0
    %134 = vmatprep.mubr.f32.mxu0 0.0
    %135 = vmatmul.mubr.f32.gmra.mrb[0].mxu0 %v42
    %v136 = vpop.f32.mrb[0].mxu0
    %v137 = vadd.f32 0.0, %v136
    %v138 = vpop.f32.mrb[0].mxu0
    %139 = vmatprep.mubr.f32.mxu0 0.0
    %140 = vmatmul.mubr.f32.gmra.mrb[0].mxu0 %v43
    %v141 = vpop.f32.mrb[0].mxu0
    %v142 = vadd.f32 0.0, %v141
    %v143 = vpop.f32.mrb[0].mxu0
    %144 = vdwg.mxu0
    %145 = vst [vmem:[#allocation7] sm:$0xff] %v127
    %146 = vst [vmem:[#allocation7 + $0x8] sm:$0xff] %v132
    %147 = vst [vmem:[#allocation7 + $0x10] sm:$0xff] %v137
    %148 = vst [vmem:[#allocation7 + $0x18] sm:$0xff] %v142
    // Predicated region
    $region18: #{tpu_custom_call.1} parent=1 // pred_check
      _
    $region19: #{tpu_custom_call.1} parent=1 // pred_check_branch
      %150 = sbr.rel (0) target = $region21
    $region20: #{tpu_custom_call.1} parent=1 // pred_region
      %s152 = ssub.s32 512, 512
      %153 = vsyncadd [#allocation4], %s152
      %s154 = sshll.u32 [#allocation7], 4
      %s155 = int_to_ptr.vmem [resolvable:$true] %s154
      %160 = dma.vmem_to_hbm [thread:$0]  %s155, 512, %s2, [#allocation4], 128, 128, 8
    $region21: #{tpu_custom_call.1} parent=1 // pred_fallthru
      _
    // Predicated region
    $region22: #{tpu_custom_call.1} parent=1 // pred_check
      _
    $region23: #{tpu_custom_call.1} parent=1 // pred_check_branch
      %162 = sbr.rel (0) target = $region25
    $region24: #{tpu_custom_call.1} parent=1 // pred_region
      %163 = dma.done [#allocation4], 512
    $region25: #{tpu_custom_call.1} parent=1 // pred_fallthru
      _
    %164 = vsyncpa [#allocation3], 1
    %165 = vsyncpa [#allocation6], 1
    %166 = vsyncpa [#allocation4], 1

</llo_original>
